<compile_context>
chip_gen: v6e
topology: v6e:2x2x1
jax: 0.10.0
libtpu: 0.0.40
codegen_flags: <defaults>
</compile_context>

<pallas_src>
import jax
import jax.numpy as jnp
from jax.experimental import pallas as pl
from jax.experimental.pallas import tpu as pltpu

_LANES = 128
_SUBLANES = 8


def _make_kernel(block_rows, steps, rows, need_mask):
    """Builds the per-block kernel with static tiling parameters closed over."""

    def _partial_sums(p, a):
        # Two logs, no divide: identical EUP cost to the divide form but fewer
        # VALU ops and one less rounding step.
        d = jnp.log(p + 1.0) - jnp.log(a + 1.0)
        sq = d * d
        # Fold sublane-groups of 8 rows with pure VPU adds into one (8, 128)
        # vreg; reshape keeps the (8, 128) tile boundary so it is layout-free.
        return jnp.sum(
            sq.reshape(block_rows // _SUBLANES, _SUBLANES, _LANES), axis=0
        )

    def kernel(p_ref, a_ref, out_ref):
        c = pl.program_id(0)   # leading (core-split) axis
        i = pl.program_id(1)   # "arbitrary" reduction axis

        @pl.when(i == 0)
        def _():
            out_ref[...] = jnp.zeros_like(out_ref)

        p = p_ref[...].astype(jnp.float32)
        a = a_ref[...].astype(jnp.float32)

        if need_mask:
            # Logical (unclamped) first row this grid step is responsible for.
            base = (c * steps + i) * block_rows

            # Only the step(s) that straddle / exceed `rows` pay the mask;
            # interior steps take the unmasked fast path below.
            @pl.when(base + block_rows > rows)
            def _():
                row = base + jax.lax.broadcasted_iota(jnp.int32, p.shape, 0)
                valid = row < rows
                # Mask BEFORE the log so clamped/garbage rows give
                # log(1) - log(1) = 0 and contribute nothing (and never NaN).
                pm = jnp.where(valid, p, 0.0)
                am = jnp.where(valid, a, 0.0)
                out_ref[0] += _partial_sums(pm, am)

            @pl.when(base + block_rows <= rows)
            def _():
                out_ref[0] += _partial_sums(p, a)
        else:
            out_ref[0] += _partial_sums(p, a)

    return kernel


def _device_kind():
    try:
        return (jax.devices()[0].device_kind or "").lower()
    except Exception:
        return ""


def rmsle_loss(pred, actual):
    """RMSLE: sqrt(mean((log(pred+1) - log(actual+1))^2)) over all elements."""
    assert pred.shape == actual.shape
    n = pred.size

    # Keep native dtype in HBM; cast to f32 inside the kernel.
    p = pred.reshape(-1)
    a = actual.reshape(-1)

    # Only pad when numel is not a multiple of 8*128 (rare for NN tensors);
    # zero padding contributes log(1) - log(1) = 0.
    chunk = _SUBLANES * _LANES
    if n % chunk != 0:
        pad = chunk - n % chunk
        p = jnp.pad(p, (0, pad))
        a = jnp.pad(a, (0, pad))

    rows = p.size // _LANES          # multiple of 8
    p = p.reshape(rows, _LANES)
    a = a.reshape(rows, _LANES)

    # Generation-aware tile / VMEM budget:
    #  - v6e: 8192-row blocks (4 MiB/input, 16 MiB double-buffered) within a
    #    64 MiB scoped limit (128 MiB physical).
    #  - v5e (16 MiB scoped default) / v7x (64 MiB physical per TC) / unknown:
    #    4096-row blocks within an explicit 32 MiB scoped limit.
    kind = _device_kind()
    multi_core = "v7" in kind
    if "v6" in kind:
        max_rows, vmem_bytes = 8192, 64 * 1024 * 1024
    else:
        max_rows, vmem_bytes = 4096, 32 * 1024 * 1024

    block_rows = min(max_rows, rows)
    num_blocks = pl.cdiv(rows, block_rows)
    # Split the stream across the two TensorCores only when the chip actually
    # has two (v7x) and there is more than one block to share.
    num_leading = 2 if (multi_core and num_blocks >= 2) else 1
    steps = pl.cdiv(num_blocks, num_leading)
    need_mask = (num_leading * steps * block_rows) != rows

    def in_index(c, i):
        # Clamp surplus / tail block indices in-bounds; their contribution is
        # zeroed by the in-kernel logical-row mask, so nothing double-counts.
        return (jnp.minimum(c * steps + i, num_blocks - 1), 0)

    kernel = _make_kernel(block_rows, steps, rows, need_mask)

    def run(leading_sem):
        return pl.pallas_call(
            kernel,
            out_shape=jax.ShapeDtypeStruct(
                (num_leading, _SUBLANES, _LANES), jnp.float32
            ),
            grid_spec=pltpu.PrefetchScalarGridSpec(
                num_scalar_prefetch=0,
                grid=(num_leading, steps),
                in_specs=[
                    pl.BlockSpec((block_rows, _LANES), in_index),
                    pl.BlockSpec((block_rows, _LANES), in_index),
                ],
                out_specs=pl.BlockSpec(
                    (1, _SUBLANES, _LANES), lambda c, i: (c, 0, 0)
                ),
            ),
            compiler_params=pltpu.CompilerParams(
                dimension_semantics=(leading_sem, "arbitrary"),
                vmem_limit_bytes=vmem_bytes,
            ),
        )(p, a)

    if num_leading == 2:
        # CORE_PARALLEL makes the 2-TC split actually happen on v7x; fall back
        # to plain "parallel" if this build rejects it.
        try:
            partials = run(pltpu.CORE_PARALLEL)
        except Exception:
            partials = run("parallel")
    else:
        partials = run("arbitrary")

    # Scalar glue: final sublane/lane/core reduce, mean over true element
    # count, and sqrt (negligible cost).
    return jnp.sqrt(jnp.sum(partials) / jnp.float32(n))


if __name__ == "__main__":
    key = jax.random.PRNGKey(0)
    k1, k2 = jax.random.split(key)
    # Small NCHW-shaped inputs; values strictly positive (log domain), as the
    # PyTorch module assumes.
    shape = (2, 4, 16, 16)
    pred = jax.random.uniform(k1, shape, dtype=jnp.float32, minval=0.1, maxval=5.0)
    actual = jax.random.uniform(k2, shape, dtype=jnp.float32, minval=0.1, maxval=5.0)

    loss = jax.block_until_ready(rmsle_loss(pred, actual))

    # Pure-JAX reference check.
    ref = jnp.sqrt(jnp.mean((jnp.log(pred + 1.0) - jnp.log(actual + 1.0)) ** 2))
    assert jnp.allclose(loss, ref, rtol=1e-5, atol=1e-6), (loss, ref)

    print("KERNEL_OK")
</pallas_src>

<mosaic_0001>
module attributes {stable_mosaic.version = 11 : i64} {
  func.func @kernel(%arg0: i32, %arg1: i32, %arg2: memref<16x128xf32, #tpu.memory_space<vmem>>, %arg3: memref<16x128xf32, #tpu.memory_space<vmem>>, %arg4: memref<1x8x128xf32, #tpu.memory_space<vmem>>) attributes {dimension_semantics = [#tpu.dimension_semantics<arbitrary>, #tpu.dimension_semantics<arbitrary>], iteration_bounds = array<i64: 1, 1>, scalar_prefetch = 0 : i64, scratch_operands = 0 : i64, tpu.core_type = #tpu.core_type<tc>, window_params = [{transform_indices = @transform_0, window_bounds = array<i64: 16, 128>}, {transform_indices = @transform_1, window_bounds = array<i64: 16, 128>}, {transform_indices = @transform_2, window_bounds = array<i64: 1, 8, 128>}]} {
    %c0_i32 = arith.constant 0 : i32
    %0 = arith.cmpi eq, %arg1, %c0_i32 : i32
    %1 = arith.extui %0 : i1 to i32
    %c0_i32_0 = arith.constant 0 : i32
    %2 = arith.cmpi ne, %1, %c0_i32_0 : i32
    scf.if %2 {
      %cst_12 = arith.constant 0.000000e+00 : f32
      %21 = vector.broadcast %cst_12 : f32 to vector<1x8x128xf32>
      %c0_13 = arith.constant 0 : index
      %c0_14 = arith.constant 0 : index
      %c0_15 = arith.constant 0 : index
      %22 = vector.load %arg4[%c0_13, %c0_14, %c0_15] : memref<1x8x128xf32, #tpu.memory_space<vmem>>, vector<1x8x128xf32>
      tpu.vector_store %arg4[%c0_13, %c0_14, %c0_15], %21 {strides = array<i32>} : memref<1x8x128xf32, #tpu.memory_space<vmem>>, vector<1x8x128xf32>,
    } else {
    }
    %c0 = arith.constant 0 : index
    %c0_1 = arith.constant 0 : index
    %3 = vector.load %arg2[%c0, %c0_1] : memref<16x128xf32, #tpu.memory_space<vmem>>, vector<16x128xf32>
    %c0_2 = arith.constant 0 : index
    %c0_3 = arith.constant 0 : index
    %4 = vector.load %arg3[%c0_2, %c0_3] : memref<16x128xf32, #tpu.memory_space<vmem>>, vector<16x128xf32>
    %c0_4 = arith.constant 0 : index
    %c0_5 = arith.constant 0 : index
    %c0_6 = arith.constant 0 : index
    %5 = vector.load %arg4[%c0_4, %c0_5, %c0_6] : memref<1x8x128xf32, #tpu.memory_space<vmem>>, vector<1x8x128xf32>
    %6 = vector.shape_cast %5 : vector<1x8x128xf32> to vector<8x128xf32>
    %cst = arith.constant 1.000000e+00 : f32
    %7 = vector.broadcast %cst : f32 to vector<16x128xf32>
    %8 = arith.addf %3, %7 : vector<16x128xf32>
    %9 = math.log %8 : vector<16x128xf32>
    %cst_7 = arith.constant 1.000000e+00 : f32
    %10 = vector.broadcast %cst_7 : f32 to vector<16x128xf32>
    %11 = arith.addf %4, %10 : vector<16x128xf32>
    %12 = math.log %11 : vector<16x128xf32>
    %13 = arith.subf %9, %12 : vector<16x128xf32>
    %14 = arith.mulf %13, %13 : vector<16x128xf32>
    %15 = vector.shape_cast %14 : vector<16x128xf32> to vector<2x8x128xf32>
    %cst_8 = arith.constant dense<0.000000e+00> : vector<8x128xf32>
    %16 = vector.multi_reduction <add>, %15, %cst_8 [0] : vector<2x8x128xf32> to vector<8x128xf32>
    %17 = arith.addf %6, %16 : vector<8x128xf32>
    %c0_9 = arith.constant 0 : index
    %c0_10 = arith.constant 0 : index
    %c0_11 = arith.constant 0 : index
    %18 = vector.load %arg4[%c0_9, %c0_10, %c0_11] : memref<1x8x128xf32, #tpu.memory_space<vmem>>, vector<1x8x128xf32>
    %19 = vector.shape_cast %18 : vector<1x8x128xf32> to vector<8x128xf32>
    %20 = vector.shape_cast %17 : vector<8x128xf32> to vector<1x8x128xf32>
    tpu.vector_store %arg4[%c0_9, %c0_10, %c0_11], %20 {strides = array<i32>} : memref<1x8x128xf32, #tpu.memory_space<vmem>>, vector<1x8x128xf32>,
    return
  }
  func.func @transform_0(%arg0: i32, %arg1: i32) -> (i32, i32) {
    %c1_i32 = arith.constant 1 : i32
    %0 = arith.muli %arg0, %c1_i32 : i32
    %1 = arith.addi %0, %arg1 : i32
    %c0_i32 = arith.constant 0 : i32
    %2 = arith.minsi %1, %c0_i32 : i32
    %c0_i32_0 = arith.constant 0 : i32
    %c0_i32_1 = arith.constant 0 : i32
    return %2, %c0_i32_0 : i32, i32
  }
  func.func @transform_1(%arg0: i32, %arg1: i32) -> (i32, i32) {
    %c1_i32 = arith.constant 1 : i32
    %0 = arith.muli %arg0, %c1_i32 : i32
    %1 = arith.addi %0, %arg1 : i32
    %c0_i32 = arith.constant 0 : i32
    %2 = arith.minsi %1, %c0_i32 : i32
    %c0_i32_0 = arith.constant 0 : i32
    %c0_i32_1 = arith.constant 0 : i32
    return %2, %c0_i32_0 : i32, i32
  }
  func.func @transform_2(%arg0: i32, %arg1: i32) -> (i32, i32, i32) {
    %c0_i32 = arith.constant 0 : i32
    %c0_i32_0 = arith.constant 0 : i32
    %c0_i32_1 = arith.constant 0 : i32
    return %arg0, %c0_i32, %c0_i32_0 : i32, i32, i32
  }
}

</mosaic_0001>

<llo_original>
// kernel: tpu_custom_call.1
$region0: #{tpu_custom_call.1}
  #allocation0 [shape = 'u32[]', space=smem, size = 0x4, offset = 0x4, fixed_abs, tag = 'smem constant byte address 0x4 - core index']
  #allocation1 [shape = 'u32[144,128]{1,0:T(1,128)}', space=vmem, size = 0x12000, scoped, tag = 'internal scratch']
  %s0 = inlined_call_operand.hbm [shape: f32[16,128], index: 0, kind: input, shape index: {}]
  %s1 = inlined_call_operand.hbm [shape: f32[16,128], index: 1, kind: input, shape index: {}]
  %s2 = inlined_call_operand.hbm [shape: f32[1,8,128], index: 2, kind: output, shape index: {}]
  %s3 = sld [smem:[#allocation0]]
  $region30: #{tpu_custom_call.1} parent=0
    _
  %s5 = ssub.s32 1, %s3
  %s6 = scalar_select 0, %s5, %s3
  $region1: #{tpu_custom_call.1} parent=0
    #allocation2 [shape = 'u8[8192]{0}', space=vmem, size = 0x2000, scoped, tag = 'input window, operand 0, single buffered']
    #allocation3 [shape = 's32[1]{0}', space=sflag, size = 0x4, scoped, tag = 'scoped memory for tpu_custom_call.1']
    #allocation4 [shape = 's32[1]{0}', space=sflag, size = 0x4, scoped, tag = 'scoped memory for tpu_custom_call.1']
    #allocation5 [shape = 'u8[8192]{0}', space=vmem, size = 0x2000, scoped, tag = 'input window, operand 1, single buffered']
    #allocation6 [shape = 's32[1]{0}', space=sflag, size = 0x4, scoped, tag = 'scoped memory for tpu_custom_call.1']
    #allocation7 [shape = 'u8[4096]{0}', space=vmem, size = 0x1000, scoped, tag = 'output window, operand 0, single buffered']
    %7 = vsyncpa [#allocation3], 0
    %8 = vsyncpa [#allocation6], 0
    %9 = vsyncpa [#allocation4], 0
    // Predicated region
    $region2: #{tpu_custom_call.1} parent=1 // pred_check
      _
    $region3: #{tpu_custom_call.1} parent=1 // pred_check_branch
      %11 = sbr.rel (0) target = $region5
    $region4: #{tpu_custom_call.1} parent=1 // pred_region
      %s12 = sadd.s32 0, 0
      %p13 = scmp.lt.s32.totalorder %s12, 0
      %s14 = scalar_select %p13, %s12, 0
      %s15 = smul.u32 2, %s14
      %s17 = ssub.s32 256, 256
      %18 = vsyncadd [#allocation3], %s17
      %s19 = smul.addr %s15, 128
      %s20 = scalar_lea.hbm %s0, %s19
      %s21 = sshll.u32 [#allocation2], 4
      %s22 = int_to_ptr.vmem [resolvable:$true] %s21
      %27 = dma.hbm_to_vmem [thread:$0]  %s20, 256, %s22, [#allocation3], 128, 128, 8
    $region5: #{tpu_custom_call.1} parent=1 // pred_fallthru
      _
    // Predicated region
    $region6: #{tpu_custom_call.1} parent=1 // pred_check
      _
    $region7: #{tpu_custom_call.1} parent=1 // pred_check_branch
      %29 = sbr.rel (0) target = $region9
    $region8: #{tpu_custom_call.1} parent=1 // pred_region
      %s30 = sadd.s32 0, 0
      %p31 = scmp.lt.s32.totalorder %s30, 0
      %s32 = scalar_select %p31, %s30, 0
      %s33 = smul.u32 2, %s32
      %s35 = ssub.s32 256, 256
      %36 = vsyncadd [#allocation6], %s35
      %s37 = smul.addr %s33, 128
      %s38 = scalar_lea.hbm %s1, %s37
      %s39 = sshll.u32 [#allocation5], 4
      %s40 = int_to_ptr.vmem [resolvable:$true] %s39
      %45 = dma.hbm_to_vmem [thread:$0]  %s38, 256, %s40, [#allocation6], 128, 128, 8
    $region9: #{tpu_custom_call.1} parent=1 // pred_fallthru
      _
    // Predicated region
    $region10: #{tpu_custom_call.1} parent=1 // pred_check
      _
    $region11: #{tpu_custom_call.1} parent=1 // pred_check_branch
      %47 = sbr.rel (0) target = $region13
    $region12: #{tpu_custom_call.1} parent=1 // pred_region
      %48 = dma.done [#allocation3], 256
    $region13: #{tpu_custom_call.1} parent=1 // pred_fallthru
      _
    // Predicated region
    $region14: #{tpu_custom_call.1} parent=1 // pred_check
      _
    $region15: #{tpu_custom_call.1} parent=1 // pred_check_branch
      %50 = sbr.rel (0) target = $region17
    $region16: #{tpu_custom_call.1} parent=1 // pred_region
      %51 = dma.done [#allocation6], 256
    $region17: #{tpu_custom_call.1} parent=1 // pred_fallthru
      _
    %s52 = sadd.s32 0, 0
    %p53 = scmp.lt.s32.totalorder %s52, 0
    %s54 = scalar_select %p53, %s52, 0
    %s55 = smul.u32 2, %s54
    %s56 = sadd.s32 0, 0
    %p57 = scmp.lt.s32.totalorder %s56, 0
    %s58 = scalar_select %p57, %s56, 0
    %s59 = smul.u32 2, %s58
    %p60 = scmp.eq.s32.totalorder 0, 0
    // Predicated region
    $region18: #{tpu_custom_call.1} parent=1 // pred_check
      %p61 = pneg %p60
    $region19: #{tpu_custom_call.1} parent=1 // pred_check_branch
      %63 = sbr.rel (%p61) target = $region21
    $region20: #{tpu_custom_call.1} parent=1 // pred_region
      %64 = vst [vmem:[#allocation7] sm:$0xff] 0.0
    $region21: #{tpu_custom_call.1} parent=1 // pred_fallthru
      _
    %v65 = vld [vmem:[#allocation2] sm:$0xff]
    %v66 = vld [vmem:[#allocation2 + $0x8] sm:$0xff]
    %v67 = vld [vmem:[#allocation5] sm:$0xff]
    %v68 = vld [vmem:[#allocation5 + $0x8] sm:$0xff]
    %v69 = vld [vmem:[#allocation7] sm:$0xff]
    %v70 = vadd.f32 %v65, 1.0
    %v71 = vadd.f32 %v66, 1.0
    %v72 = vlog2.pop %v70
    %v73 = vmul.f32 %v72, 0.6931472
    %v74 = vlog2.pop %v71
    %v75 = vmul.f32 %v74, 0.6931472
    %v76 = vadd.f32 %v67, 1.0
    %v77 = vadd.f32 %v68, 1.0
    %v78 = vlog2.pop %v76
    %v79 = vmul.f32 %v78, 0.6931472
    %v80 = vlog2.pop %v77
    %v81 = vmul.f32 %v80, 0.6931472
    %v82 = vsub.f32 %v73, %v79
    %v83 = vsub.f32 %v75, %v81
    %v84 = vmul.f32 %v82, %v82
    %v85 = vmul.f32 %v83, %v83
    %v86 = vadd.f32 %v84, %v85
    %v87 = vadd.f32 %v69, %v86
    %88 = vst [vmem:[#allocation7] sm:$0xff] %v87
    // Predicated region
    $region22: #{tpu_custom_call.1} parent=1 // pred_check
      _
    $region23: #{tpu_custom_call.1} parent=1 // pred_check_branch
      %90 = sbr.rel (0) target = $region25
    $region24: #{tpu_custom_call.1} parent=1 // pred_region
      %s92 = ssub.s32 128, 128
      %93 = vsyncadd [#allocation4], %s92
      %s95 = sshll.u32 [#allocation7], 4
      %s96 = int_to_ptr.vmem [resolvable:$true] %s95
      %98 = dma.vmem_to_hbm [thread:$0]  %s96, 128, %s2, [#allocation4]
    $region25: #{tpu_custom_call.1} parent=1 // pred_fallthru
      _
    // Predicated region
    $region26: #{tpu_custom_call.1} parent=1 // pred_check
      _
    $region27: #{tpu_custom_call.1} parent=1 // pred_check_branch
      %100 = sbr.rel (0) target = $region29
    $region28: #{tpu_custom_call.1} parent=1 // pred_region
      %101 = dma.done [#allocation4], 128
    $region29: #{tpu_custom_call.1} parent=1 // pred_fallthru
      _
    %102 = vsyncpa [#allocation3], 1
    %103 = vsyncpa [#allocation6], 1
    %104 = vsyncpa [#allocation4], 1

</llo_original>
